<compile_context>
chip_gen: v7x
topology: tpu7x:2x2x1
jax: 0.10.0
libtpu: 0.0.40
codegen_flags: <defaults>
</compile_context>

<pallas_src>
import math

import jax
import jax.numpy as jnp
import numpy as np
from jax.experimental import pallas as pl
from jax.experimental.pallas import tpu as pltpu

# Network configuration (consistent with NN_MLP(layer_info)):
#   layer_info = [din, h, h, h, h, dout] -> 4 hidden (Linear+GELU) layers,
#   BatchNorm1d after hidden layers 0,1,2, then a final Linear.
LAYER_INFO = [8, 32, 32, 32, 32, 4]
N_LAYERS = len(LAYER_INFO) - 1  # 5 linear layers total
BN_EPS = 1e-5

PAD = 128                 # lane width
PACK = 4                  # batch rows packed per 128-lane row
SUB = PAD // PACK         # 32 lanes per packed slot (>= widest feature dim)
ALIGN = 16                # sublane alignment for the batch tile (bf16-safe)

assert max(LAYER_INFO) <= SUB

_INV_SQRT2 = 1.0 / math.sqrt(2.0)
_GELU_C = math.sqrt(2.0 / math.pi)


def _gelu_exact(x):
    # torch.nn.GELU() default — used only in the host-side reference.
    return 0.5 * x * (1.0 + jax.lax.erf(x * _INV_SQRT2))


def _gelu_tanh(x):
    # tanh approximation — jnp.tanh lowers to the EUP (otherwise-idle slot).
    return 0.5 * x * (1.0 + jnp.tanh(_GELU_C * (x + 0.044715 * (x * x * x))))


# -----------------------------------------------------------------------------
# Kernel
# -----------------------------------------------------------------------------
def mlp_kernel(x_ref, w_ref, b_ref, o_ref):
    """x_ref: (tile, 128) bf16 packed activations (4 batch rows per lane-row)
       w_ref: (5, 128, 128) bf16 block-diagonal weight slab (grid-resident)
       b_ref: (8, 128) f32 bias slab (rows 0..4 valid)
       o_ref: (tile, 128) f32 packed outputs."""
    h = x_ref[...]                                                   # bf16
    for layer in range(N_LAYERS - 1):
        z = jnp.dot(h, w_ref[layer], preferred_element_type=jnp.float32)   # MXU
        a = _gelu_tanh(z + b_ref[layer:layer + 1, :])                # f32 VPU+EUP
        h = a.astype(jnp.bfloat16)                                   # cast at MXU boundary only
    o_ref[...] = (
        jnp.dot(h, w_ref[N_LAYERS - 1], preferred_element_type=jnp.float32)
        + b_ref[N_LAYERS - 1:N_LAYERS, :]
    )


# -----------------------------------------------------------------------------
# Parameter construction / folding / packing (JAX glue, outside the kernel)
# -----------------------------------------------------------------------------
def make_params(key, layer_info):
    """Deterministic PyTorch-like init: U(-1/sqrt(fan_in), 1/sqrt(fan_in)) for
    Linear weights/biases; BatchNorm gamma=1, beta=0, running stats perturbed
    slightly so the eval-mode affine is non-trivial."""
    params = {}
    n = len(layer_info) - 1
    keys = jax.random.split(key, 4 * n)
    ki = 0
    for i in range(n):
        fan_in, fan_out = layer_info[i], layer_info[i + 1]
        bound = 1.0 / math.sqrt(fan_in)
        # Stored as (in, out) — already transposed for x @ W.
        w = jax.random.uniform(keys[ki], (fan_in, fan_out), jnp.float32, -bound, bound); ki += 1
        b = jax.random.uniform(keys[ki], (1, fan_out), jnp.float32, -bound, bound); ki += 1
        params[f"w{i}"] = w
        params[f"b{i}"] = b
        if i < n - 1 and i <= 2:
            gamma = jnp.ones((1, fan_out), jnp.float32)
            beta = jnp.zeros((1, fan_out), jnp.float32)
            rmean = 0.1 * jax.random.normal(keys[ki], (1, fan_out), jnp.float32); ki += 1
            rvar = 1.0 + 0.1 * jax.random.uniform(keys[ki], (1, fan_out), jnp.float32); ki += 1
            # eval-mode BN as affine: y = x * scale + shift
            scale = gamma / jnp.sqrt(rvar + BN_EPS)
            shift = beta - rmean * scale
            params[f"s{i}"] = scale
            params[f"t{i}"] = shift
    return params


def _fold_bn(params):
    """Fold each eval-mode BN affine (after hidden layers 0,1,2) into the NEXT
    Linear:  (g*s + t) @ W + b  ==  g @ (diag(s) W) + (t @ W + b)."""
    Ws = [params[f"w{i}"] for i in range(N_LAYERS)]
    bs = [params[f"b{i}"] for i in range(N_LAYERS)]
    for i in (0, 1, 2):
        s, t = params[f"s{i}"], params[f"t{i}"]
        bs[i + 1] = t @ Ws[i + 1] + bs[i + 1]
        Ws[i + 1] = s.reshape(-1, 1) * Ws[i + 1]
    return Ws, bs


def _pack_params(params):
    """Fold BN, then build block-diagonal 128x128 weights (PACK independent
    copies of each <=32x32 layer block) so PACK batch rows ride in one
    128-lane row. Weights in bf16 (MXU-native), biases in f32."""
    Ws, bs = _fold_bn(params)
    eye = jnp.eye(PACK, dtype=jnp.float32)

    def pad_w(w):
        fi, fo = w.shape
        blk = jnp.zeros((SUB, SUB), jnp.float32).at[:fi, :fo].set(w)
        return jnp.kron(eye, blk)                      # (128, 128) block-diagonal

    def pad_b(b):
        blk = jnp.zeros((SUB,), jnp.float32).at[: b.shape[1]].set(b[0])
        return jnp.tile(blk, PACK)                     # (128,)

    w_stack = jnp.stack([pad_w(w) for w in Ws]).astype(jnp.bfloat16)   # (5,128,128) bf16
    b_stack = jnp.zeros((8, PAD), jnp.float32).at[:N_LAYERS].set(       # (8,128) f32
        jnp.stack([pad_b(b) for b in bs])
    )
    return w_stack, b_stack


def _round_up(x, m):
    return ((x + m - 1) // m) * m


# -----------------------------------------------------------------------------
# Host wrapper
# -----------------------------------------------------------------------------
def nn_mlp_forward(x, params, *, max_packed_tile=1024):
    """max_packed_tile is in packed rows (1 packed row = PACK batch rows)."""
    B, din = x.shape
    dout = LAYER_INFO[-1]
    assert din == LAYER_INFO[0]

    w_stack, b_stack = _pack_params(params)

    # --- batch tiling over packed rows ---------------------------------------
    Bp = -(-B // PACK)                                   # packed rows needed
    tile = min(max_packed_tile, _round_up(Bp, ALIGN))
    if Bp >= 2 * ALIGN:
        # Guarantee >= 2 grid steps when the batch allows it, so the "parallel"
        # batch axis can shard across both v7x TensorCores.
        tile = min(tile, _round_up(-(-Bp // 2), ALIGN))
    Bp_pad = _round_up(Bp, tile)
    grid = (Bp_pad // tile,)

    # --- pack PACK batch rows per 128-lane row, already in bf16 ---------------
    # packed row i, lane block j (lanes [j*SUB, (j+1)*SUB)) holds batch row PACK*i + j.
    x_rows = jnp.zeros((Bp_pad * PACK, SUB), jnp.bfloat16)
    x_rows = x_rows.at[:B, :din].set(x.astype(jnp.bfloat16))
    x_packed = x_rows.reshape(Bp_pad, PAD)               # lane-dense (Bp_pad, 128)

    in_specs = [
        pl.BlockSpec((tile, PAD), lambda i: (i, 0)),               # activations tile
        pl.BlockSpec((N_LAYERS, PAD, PAD), lambda i: (0, 0, 0)),   # weight slab (resident)
        pl.BlockSpec((8, PAD), lambda i: (0, 0)),                  # bias slab (resident)
    ]
    out_specs = pl.BlockSpec((tile, PAD), lambda i: (i, 0))

    cost = pl.CostEstimate(
        flops=2 * Bp_pad * N_LAYERS * PAD * PAD,
        transcendentals=(N_LAYERS - 1) * Bp_pad * PAD,             # tanh per element
        bytes_accessed=(2 * Bp_pad * PAD                           # bf16 input
                        + 4 * Bp_pad * PAD                         # f32 output
                        + 2 * N_LAYERS * PAD * PAD                 # bf16 weights
                        + 4 * 8 * PAD),                            # f32 biases
    )

    out_packed = pl.pallas_call(
        mlp_kernel,
        out_shape=jax.ShapeDtypeStruct((Bp_pad, PAD), jnp.float32),
        grid_spec=pl.GridSpec(grid=grid, in_specs=in_specs, out_specs=out_specs),
        compiler_params=pltpu.CompilerParams(dimension_semantics=("parallel",)),
        cost_estimate=cost,
    )(x_packed, w_stack, b_stack)

    # un-pack: packed row i, lane block j -> batch row PACK*i + j
    out_rows = out_packed.reshape(Bp_pad * PACK, SUB)
    return out_rows[:B, :dout]


# -----------------------------------------------------------------------------
# References
# -----------------------------------------------------------------------------
def nn_mlp_reference(x, params):
    """Exact eval-mode forward of the PyTorch module (f32, erf GELU, unfolded BN)."""
    h = x
    h = _gelu_exact(h @ params["w0"] + params["b0"]) * params["s0"] + params["t0"]
    h = _gelu_exact(h @ params["w1"] + params["b1"]) * params["s1"] + params["t1"]
    h = _gelu_exact(h @ params["w2"] + params["b2"]) * params["s2"] + params["t2"]
    h = _gelu_exact(h @ params["w3"] + params["b3"])
    return h @ params["w4"] + params["b4"]


def nn_mlp_matched_reference(x, params):
    """Pure-JAX reference with the kernel's numerics (folded BN, bf16 MXU
    operands, f32 accumulation, tanh GELU) — tight structural check."""
    Ws, bs = _fold_bn(params)
    h = x.astype(jnp.bfloat16)
    for i in range(N_LAYERS - 1):
        z = jnp.dot(h, Ws[i].astype(jnp.bfloat16),
                    preferred_element_type=jnp.float32) + bs[i]
        h = _gelu_tanh(z).astype(jnp.bfloat16)
    return jnp.dot(h, Ws[-1].astype(jnp.bfloat16),
                   preferred_element_type=jnp.float32) + bs[-1]


if __name__ == "__main__":
    key = jax.random.PRNGKey(0)
    kx, kp = jax.random.split(key)

    B = 16  # small test batch; wrapper handles any B (packs/pads rows itself)
    x = jax.random.normal(kx, (B, LAYER_INFO[0]), dtype=jnp.float32)
    params = make_params(kp, LAYER_INFO)

    out = nn_mlp_forward(x, params)
    out = jax.block_until_ready(out)
    out_np = np.asarray(out)

    # Structural check vs. a pure-JAX reference with the same numerics.
    matched = np.asarray(nn_mlp_matched_reference(x, params))
    np.testing.assert_allclose(out_np, matched, rtol=1e-3, atol=1e-3)

    # Fidelity check vs. the exact PyTorch-semantics forward; tolerance relaxed
    # to cover bf16 matmul operands + tanh-approx GELU.
    exact = np.asarray(nn_mlp_reference(x, params))
    np.testing.assert_allclose(out_np, exact, rtol=5e-2, atol=2e-2)

    print("KERNEL_OK")
</pallas_src>

<mosaic_0001>
module attributes {stable_mosaic.version = 11 : i64} {
  func.func @mlp_kernel(%arg0: i32, %arg1: memref<16x128xbf16, #tpu.memory_space<vmem>>, %arg2: memref<5x128x128xbf16, #tpu.memory_space<vmem>>, %arg3: memref<8x128xf32, #tpu.memory_space<vmem>>, %arg4: memref<16x128xf32, #tpu.memory_space<vmem>>) attributes {dimension_semantics = [#tpu.dimension_semantics<parallel>], iteration_bounds = array<i64: 1>, scalar_prefetch = 0 : i64, scratch_operands = 0 : i64, tpu.core_type = #tpu.core_type<tc>, window_params = [{transform_indices = @transform_0, window_bounds = array<i64: 16, 128>}, {pipeline_mode = #tpu.pipeline_mode<synchronous>, transform_indices = @transform_1, window_bounds = array<i64: 5, 128, 128>}, {pipeline_mode = #tpu.pipeline_mode<synchronous>, transform_indices = @transform_2, window_bounds = array<i64: 8, 128>}, {transform_indices = @transform_3, window_bounds = array<i64: 16, 128>}]} {
    %c0 = arith.constant 0 : index
    %c0_0 = arith.constant 0 : index
    %0 = vector.load %arg1[%c0, %c0_0] : memref<16x128xbf16, #tpu.memory_space<vmem>>, vector<16x128xbf16>
    %c0_1 = arith.constant 0 : index
    %c0_2 = arith.constant 0 : index
    %c0_3 = arith.constant 0 : index
    %1 = vector.load %arg2[%c0_1, %c0_2, %c0_3] : memref<5x128x128xbf16, #tpu.memory_space<vmem>>, vector<1x128x128xbf16>
    %2 = vector.shape_cast %1 : vector<1x128x128xbf16> to vector<128x128xbf16>
    %cst = arith.constant dense<0.000000e+00> : vector<16x128xf32>
    %3 = tpu.matmul %0, %2, %cst {dimension_numbers = #tpu.dot_dimension_numbers<[1], [0], [0], [1], [0, 0, 1, 1], [], []>} : vector<16x128xbf16>, vector<128x128xbf16>, vector<16x128xf32> -> vector<16x128xf32>
    %c0_4 = arith.constant 0 : index
    %c0_5 = arith.constant 0 : index
    %4 = vector.load %arg3[%c0_4, %c0_5] : memref<8x128xf32, #tpu.memory_space<vmem>>, vector<1x128xf32>
    %5 = vector.broadcast %4 : vector<1x128xf32> to vector<16x128xf32>
    %6 = arith.addf %3, %5 : vector<16x128xf32>
    %cst_6 = arith.constant 5.000000e-01 : f32
    %7 = vector.broadcast %cst_6 : f32 to vector<16x128xf32>
    %8 = arith.mulf %7, %6 : vector<16x128xf32>
    %9 = arith.mulf %6, %6 : vector<16x128xf32>
    %10 = arith.mulf %9, %6 : vector<16x128xf32>
    %cst_7 = arith.constant 4.471500e-02 : f32
    %11 = vector.broadcast %cst_7 : f32 to vector<16x128xf32>
    %12 = arith.mulf %11, %10 : vector<16x128xf32>
    %13 = arith.addf %6, %12 : vector<16x128xf32>
    %cst_8 = arith.constant 0.797884583 : f32
    %14 = vector.broadcast %cst_8 : f32 to vector<16x128xf32>
    %15 = arith.mulf %14, %13 : vector<16x128xf32>
    %16 = math.tanh %15 : vector<16x128xf32>
    %cst_9 = arith.constant 1.000000e+00 : f32
    %17 = vector.broadcast %cst_9 : f32 to vector<16x128xf32>
    %18 = arith.addf %17, %16 : vector<16x128xf32>
    %19 = arith.mulf %8, %18 : vector<16x128xf32>
    %20 = arith.truncf %19 : vector<16x128xf32> to vector<16x128xbf16>
    %c1 = arith.constant 1 : index
    %c0_10 = arith.constant 0 : index
    %c0_11 = arith.constant 0 : index
    %21 = vector.load %arg2[%c1, %c0_10, %c0_11] : memref<5x128x128xbf16, #tpu.memory_space<vmem>>, vector<1x128x128xbf16>
    %22 = vector.shape_cast %21 : vector<1x128x128xbf16> to vector<128x128xbf16>
    %cst_12 = arith.constant dense<0.000000e+00> : vector<16x128xf32>
    %23 = tpu.matmul %20, %22, %cst_12 {dimension_numbers = #tpu.dot_dimension_numbers<[1], [0], [0], [1], [0, 0, 1, 1], [], []>} : vector<16x128xbf16>, vector<128x128xbf16>, vector<16x128xf32> -> vector<16x128xf32>
    %c1_13 = arith.constant 1 : index
    %c0_14 = arith.constant 0 : index
    %24 = vector.load %arg3[%c1_13, %c0_14] : memref<8x128xf32, #tpu.memory_space<vmem>>, vector<1x128xf32>
    %25 = vector.broadcast %24 : vector<1x128xf32> to vector<16x128xf32>
    %26 = arith.addf %23, %25 : vector<16x128xf32>
    %cst_15 = arith.constant 5.000000e-01 : f32
    %27 = vector.broadcast %cst_15 : f32 to vector<16x128xf32>
    %28 = arith.mulf %27, %26 : vector<16x128xf32>
    %29 = arith.mulf %26, %26 : vector<16x128xf32>
    %30 = arith.mulf %29, %26 : vector<16x128xf32>
    %cst_16 = arith.constant 4.471500e-02 : f32
    %31 = vector.broadcast %cst_16 : f32 to vector<16x128xf32>
    %32 = arith.mulf %31, %30 : vector<16x128xf32>
    %33 = arith.addf %26, %32 : vector<16x128xf32>
    %cst_17 = arith.constant 0.797884583 : f32
    %34 = vector.broadcast %cst_17 : f32 to vector<16x128xf32>
    %35 = arith.mulf %34, %33 : vector<16x128xf32>
    %36 = math.tanh %35 : vector<16x128xf32>
    %cst_18 = arith.constant 1.000000e+00 : f32
    %37 = vector.broadcast %cst_18 : f32 to vector<16x128xf32>
    %38 = arith.addf %37, %36 : vector<16x128xf32>
    %39 = arith.mulf %28, %38 : vector<16x128xf32>
    %40 = arith.truncf %39 : vector<16x128xf32> to vector<16x128xbf16>
    %c2 = arith.constant 2 : index
    %c0_19 = arith.constant 0 : index
    %c0_20 = arith.constant 0 : index
    %41 = vector.load %arg2[%c2, %c0_19, %c0_20] : memref<5x128x128xbf16, #tpu.memory_space<vmem>>, vector<1x128x128xbf16>
    %42 = vector.shape_cast %41 : vector<1x128x128xbf16> to vector<128x128xbf16>
    %cst_21 = arith.constant dense<0.000000e+00> : vector<16x128xf32>
    %43 = tpu.matmul %40, %42, %cst_21 {dimension_numbers = #tpu.dot_dimension_numbers<[1], [0], [0], [1], [0, 0, 1, 1], [], []>} : vector<16x128xbf16>, vector<128x128xbf16>, vector<16x128xf32> -> vector<16x128xf32>
    %c2_22 = arith.constant 2 : index
    %c0_23 = arith.constant 0 : index
    %44 = vector.load %arg3[%c2_22, %c0_23] : memref<8x128xf32, #tpu.memory_space<vmem>>, vector<1x128xf32>
    %45 = vector.broadcast %44 : vector<1x128xf32> to vector<16x128xf32>
    %46 = arith.addf %43, %45 : vector<16x128xf32>
    %cst_24 = arith.constant 5.000000e-01 : f32
    %47 = vector.broadcast %cst_24 : f32 to vector<16x128xf32>
    %48 = arith.mulf %47, %46 : vector<16x128xf32>
    %49 = arith.mulf %46, %46 : vector<16x128xf32>
    %50 = arith.mulf %49, %46 : vector<16x128xf32>
    %cst_25 = arith.constant 4.471500e-02 : f32
    %51 = vector.broadcast %cst_25 : f32 to vector<16x128xf32>
    %52 = arith.mulf %51, %50 : vector<16x128xf32>
    %53 = arith.addf %46, %52 : vector<16x128xf32>
    %cst_26 = arith.constant 0.797884583 : f32
    %54 = vector.broadcast %cst_26 : f32 to vector<16x128xf32>
    %55 = arith.mulf %54, %53 : vector<16x128xf32>
    %56 = math.tanh %55 : vector<16x128xf32>
    %cst_27 = arith.constant 1.000000e+00 : f32
    %57 = vector.broadcast %cst_27 : f32 to vector<16x128xf32>
    %58 = arith.addf %57, %56 : vector<16x128xf32>
    %59 = arith.mulf %48, %58 : vector<16x128xf32>
    %60 = arith.truncf %59 : vector<16x128xf32> to vector<16x128xbf16>
    %c3 = arith.constant 3 : index
    %c0_28 = arith.constant 0 : index
    %c0_29 = arith.constant 0 : index
    %61 = vector.load %arg2[%c3, %c0_28, %c0_29] : memref<5x128x128xbf16, #tpu.memory_space<vmem>>, vector<1x128x128xbf16>
    %62 = vector.shape_cast %61 : vector<1x128x128xbf16> to vector<128x128xbf16>
    %cst_30 = arith.constant dense<0.000000e+00> : vector<16x128xf32>
    %63 = tpu.matmul %60, %62, %cst_30 {dimension_numbers = #tpu.dot_dimension_numbers<[1], [0], [0], [1], [0, 0, 1, 1], [], []>} : vector<16x128xbf16>, vector<128x128xbf16>, vector<16x128xf32> -> vector<16x128xf32>
    %c3_31 = arith.constant 3 : index
    %c0_32 = arith.constant 0 : index
    %64 = vector.load %arg3[%c3_31, %c0_32] : memref<8x128xf32, #tpu.memory_space<vmem>>, vector<1x128xf32>
    %65 = vector.broadcast %64 : vector<1x128xf32> to vector<16x128xf32>
    %66 = arith.addf %63, %65 : vector<16x128xf32>
    %cst_33 = arith.constant 5.000000e-01 : f32
    %67 = vector.broadcast %cst_33 : f32 to vector<16x128xf32>
    %68 = arith.mulf %67, %66 : vector<16x128xf32>
    %69 = arith.mulf %66, %66 : vector<16x128xf32>
    %70 = arith.mulf %69, %66 : vector<16x128xf32>
    %cst_34 = arith.constant 4.471500e-02 : f32
    %71 = vector.broadcast %cst_34 : f32 to vector<16x128xf32>
    %72 = arith.mulf %71, %70 : vector<16x128xf32>
    %73 = arith.addf %66, %72 : vector<16x128xf32>
    %cst_35 = arith.constant 0.797884583 : f32
    %74 = vector.broadcast %cst_35 : f32 to vector<16x128xf32>
    %75 = arith.mulf %74, %73 : vector<16x128xf32>
    %76 = math.tanh %75 : vector<16x128xf32>
    %cst_36 = arith.constant 1.000000e+00 : f32
    %77 = vector.broadcast %cst_36 : f32 to vector<16x128xf32>
    %78 = arith.addf %77, %76 : vector<16x128xf32>
    %79 = arith.mulf %68, %78 : vector<16x128xf32>
    %80 = arith.truncf %79 : vector<16x128xf32> to vector<16x128xbf16>
    %c4 = arith.constant 4 : index
    %c0_37 = arith.constant 0 : index
    %c0_38 = arith.constant 0 : index
    %81 = vector.load %arg2[%c4, %c0_37, %c0_38] : memref<5x128x128xbf16, #tpu.memory_space<vmem>>, vector<1x128x128xbf16>
    %82 = vector.shape_cast %81 : vector<1x128x128xbf16> to vector<128x128xbf16>
    %cst_39 = arith.constant dense<0.000000e+00> : vector<16x128xf32>
    %83 = tpu.matmul %80, %82, %cst_39 {dimension_numbers = #tpu.dot_dimension_numbers<[1], [0], [0], [1], [0, 0, 1, 1], [], []>} : vector<16x128xbf16>, vector<128x128xbf16>, vector<16x128xf32> -> vector<16x128xf32>
    %c4_40 = arith.constant 4 : index
    %c0_41 = arith.constant 0 : index
    %84 = vector.load %arg3[%c4_40, %c0_41] : memref<8x128xf32, #tpu.memory_space<vmem>>, vector<1x128xf32>
    %85 = vector.broadcast %84 : vector<1x128xf32> to vector<16x128xf32>
    %86 = arith.addf %83, %85 : vector<16x128xf32>
    %c0_42 = arith.constant 0 : index
    %c0_43 = arith.constant 0 : index
    %87 = vector.load %arg4[%c0_42, %c0_43] : memref<16x128xf32, #tpu.memory_space<vmem>>, vector<16x128xf32>
    tpu.vector_store %arg4[%c0_42, %c0_43], %86 {strides = array<i32>} : memref<16x128xf32, #tpu.memory_space<vmem>>, vector<16x128xf32>,
    return
  }
  func.func @transform_0(%arg0: i32) -> (i32, i32) {
    %c0_i32 = arith.constant 0 : i32
    %c0_i32_0 = arith.constant 0 : i32
    return %arg0, %c0_i32 : i32, i32
  }
  func.func @transform_1(%arg0: i32) -> (i32, i32, i32) {
    %c0_i32 = arith.constant 0 : i32
    %c0_i32_0 = arith.constant 0 : i32
    %c0_i32_1 = arith.constant 0 : i32
    %c0_i32_2 = arith.constant 0 : i32
    return %c0_i32, %c0_i32_0, %c0_i32_1 : i32, i32, i32
  }
  func.func @transform_2(%arg0: i32) -> (i32, i32) {
    %c0_i32 = arith.constant 0 : i32
    %c0_i32_0 = arith.constant 0 : i32
    %c0_i32_1 = arith.constant 0 : i32
    return %c0_i32, %c0_i32_0 : i32, i32
  }
  func.func @transform_3(%arg0: i32) -> (i32, i32) {
    %c0_i32 = arith.constant 0 : i32
    %c0_i32_0 = arith.constant 0 : i32
    return %arg0, %c0_i32 : i32, i32
  }
}

</mosaic_0001>

<llo_original>
// kernel: tpu_custom_call.1
$region0: #{tpu_custom_call.1}
  #allocation0 [shape = 'u32[]', space=smem, size = 0x4, offset = 0x4, fixed_abs, tag = 'smem constant byte address 0x4 - core index']
  #allocation1 [shape = 'u32[144,128]{1,0:T(1,128)}', space=vmem, size = 0x12000, scoped, tag = 'internal scratch']
  %s0 = inlined_call_operand.hbm [shape: bf16[16,128], index: 0, kind: input, shape index: {}]
  %s1 = inlined_call_operand.hbm [shape: bf16[5,128,128], index: 1, kind: input, shape index: {}]
  %s2 = inlined_call_operand.hbm [shape: f32[8,128], index: 2, kind: input, shape index: {}]
  %s3 = inlined_call_operand.hbm [shape: f32[16,128], index: 3, kind: output, shape index: {}]
  %s4 = sld [smem:[#allocation0]]
  $region34: #{tpu_custom_call.1} parent=0
    _
  %s6 = ssub.s32 1, %s4
  %s7 = scalar_select 0, %s6, %s4
  $region1: #{tpu_custom_call.1} parent=0
    #allocation2 [shape = 'u8[4096]{0}', space=vmem, size = 0x1000, scoped, tag = 'input window, operand 0, single buffered']
    #allocation3 [shape = 's32[1]{0}', space=sflag, size = 0x4, scoped, tag = 'scoped memory for tpu_custom_call.1']
    #allocation4 [shape = 's32[1]{0}', space=sflag, size = 0x4, scoped, tag = 'scoped memory for tpu_custom_call.1']
    #allocation5 [shape = 'u8[163840]{0}', space=vmem, size = 0x28000, scoped, tag = 'input window, operand 1, single buffered']
    #allocation6 [shape = 's32[1]{0}', space=sflag, size = 0x4, scoped, tag = 'scoped memory for tpu_custom_call.1']
    #allocation7 [shape = 'u8[4096]{0}', space=vmem, size = 0x1000, scoped, tag = 'input window, operand 2, single buffered']
    #allocation8 [shape = 'u8[8192]{0}', space=vmem, size = 0x2000, scoped, tag = 'output window, operand 0, single buffered']
    %8 = vsyncpa [#allocation3], 0
    %9 = vsyncpa [#allocation6], 0
    %10 = vsyncpa [#allocation4], 0
    // Predicated region
    $region2: #{tpu_custom_call.1} parent=1 // pred_check
      _
    $region3: #{tpu_custom_call.1} parent=1 // pred_check_branch
      %12 = sbr.rel (0) target = $region5
    $region4: #{tpu_custom_call.1} parent=1 // pred_region
      %s14 = ssub.s32 128, 128
      %15 = vsyncadd [#allocation3], %s14
      %s16 = sshll.u32 [#allocation2], 4
      %s17 = int_to_ptr.vmem [resolvable:$true] %s16
      %22 = dma.hbm_to_vmem [thread:$0]  %s0, 128, %s17, [#allocation3], 64, 64, 4
    $region5: #{tpu_custom_call.1} parent=1 // pred_fallthru
      _
    // Predicated region
    $region6: #{tpu_custom_call.1} parent=1 // pred_check
      _
    $region7: #{tpu_custom_call.1} parent=1 // pred_check_branch
      %24 = sbr.rel (0) target = $region9
    $region8: #{tpu_custom_call.1} parent=1 // pred_region
      %s26 = ssub.s32 5120, 5120
      %27 = vsyncadd [#allocation6], %s26
      %s28 = sshll.u32 [#allocation5], 4
      %s29 = int_to_ptr.vmem [resolvable:$true] %s28
      %34 = dma.hbm_to_vmem [thread:$0]  %s1, 5120, %s29, [#allocation6], 64, 64, 4
    $region9: #{tpu_custom_call.1} parent=1 // pred_fallthru
      _
    // Predicated region
    $region10: #{tpu_custom_call.1} parent=1 // pred_check
      _
    $region11: #{tpu_custom_call.1} parent=1 // pred_check_branch
      %36 = sbr.rel (0) target = $region13
    $region12: #{tpu_custom_call.1} parent=1 // pred_region
      %s38 = ssub.s32 128, 128
      %39 = vsyncadd [#allocation6], %s38
      %s41 = sshll.u32 [#allocation7], 4
      %s42 = int_to_ptr.vmem [resolvable:$true] %s41
      %44 = dma.hbm_to_vmem [thread:$0]  %s2, 128, %s42, [#allocation6]
    $region13: #{tpu_custom_call.1} parent=1 // pred_fallthru
      _
    // Predicated region
    $region14: #{tpu_custom_call.1} parent=1 // pred_check
      _
    $region15: #{tpu_custom_call.1} parent=1 // pred_check_branch
      %46 = sbr.rel (0) target = $region17
    $region16: #{tpu_custom_call.1} parent=1 // pred_region
      %47 = dma.done [#allocation3], 128
    $region17: #{tpu_custom_call.1} parent=1 // pred_fallthru
      _
    // Predicated region
    $region18: #{tpu_custom_call.1} parent=1 // pred_check
      _
    $region19: #{tpu_custom_call.1} parent=1 // pred_check_branch
      %49 = sbr.rel (0) target = $region21
    $region20: #{tpu_custom_call.1} parent=1 // pred_region
      %50 = dma.done [#allocation6], 5120
    $region21: #{tpu_custom_call.1} parent=1 // pred_fallthru
      _
    // Predicated region
    $region22: #{tpu_custom_call.1} parent=1 // pred_check
      _
    $region23: #{tpu_custom_call.1} parent=1 // pred_check_branch
      %52 = sbr.rel (0) target = $region25
    $region24: #{tpu_custom_call.1} parent=1 // pred_region
      %53 = dma.done [#allocation6], 128
    $region25: #{tpu_custom_call.1} parent=1 // pred_fallthru
      _
    %v55 = vld [vmem:[#allocation2] sm:$0xf]
    %v56 = vld [vmem:[#allocation2 + $0x4] sm:$0xf]
    %v57 = vld [vmem:[#allocation5] sm:$0xf]
    %v58 = vld [vmem:[#allocation5 + $0x4] sm:$0xf]
    %v59 = vld [vmem:[#allocation5 + $0x8] sm:$0xf]
    %v60 = vld [vmem:[#allocation5 + $0xc] sm:$0xf]
    %v61 = vld [vmem:[#allocation5 + $0x10] sm:$0xf]
    %v62 = vld [vmem:[#allocation5 + $0x14] sm:$0xf]
    %v63 = vld [vmem:[#allocation5 + $0x18] sm:$0xf]
    %v64 = vld [vmem:[#allocation5 + $0x1c] sm:$0xf]
    %v65 = vld [vmem:[#allocation5 + $0x20] sm:$0xf]
    %v66 = vld [vmem:[#allocation5 + $0x24] sm:$0xf]
    %v67 = vld [vmem:[#allocation5 + $0x28] sm:$0xf]
    %v68 = vld [vmem:[#allocation5 + $0x2c] sm:$0xf]
    %v69 = vld [vmem:[#allocation5 + $0x30] sm:$0xf]
    %v70 = vld [vmem:[#allocation5 + $0x34] sm:$0xf]
    %v71 = vld [vmem:[#allocation5 + $0x38] sm:$0xf]
    %v72 = vld [vmem:[#allocation5 + $0x3c] sm:$0xf]
    %v73 = vld [vmem:[#allocation7] sm:$0x1]
    %v74 = vlaneseq
    %v75 = vshrl.u32 %v74, 7
    %v76 = vsub.s32 0, %v75
    %v77 = vrot.slane %v73, %v76
    %v80 = vunpack.c.l.b16 %v55
    %v81 = vunpack.c.l.b16 %v56
    %v82 = vpack.c.b16 %v81, %v80
    %v100 = vunpack.c.l.b16 %v57
    %v101 = vunpack.c.l.b16 %v58
    %v102 = vunpack.c.l.b16 %v59
    %v103 = vunpack.c.l.b16 %v60
    %v104 = vunpack.c.l.b16 %v61
    %v105 = vunpack.c.l.b16 %v62
    %v106 = vunpack.c.l.b16 %v63
    %v107 = vunpack.c.l.b16 %v64
    %v108 = vunpack.c.l.b16 %v65
    %v109 = vunpack.c.l.b16 %v66
    %v110 = vunpack.c.l.b16 %v67
    %v111 = vunpack.c.l.b16 %v68
    %v112 = vunpack.c.l.b16 %v69
    %v113 = vunpack.c.l.b16 %v70
    %v114 = vunpack.c.l.b16 %v71
    %v115 = vunpack.c.l.b16 %v72
    %v116 = vpack.c.b16 %v101, %v100
    %v117 = vpack.c.b16 %v103, %v102
    %v118 = vpack.c.b16 %v105, %v104
    %v119 = vpack.c.b16 %v107, %v106
    %v120 = vpack.c.b16 %v109, %v108
    %v121 = vpack.c.b16 %v111, %v110
    %v122 = vpack.c.b16 %v113, %v112
    %v123 = vpack.c.b16 %v115, %v114
    %132 = vmatprep.subr.bf16.mxu0 0
    %133 = vmatpush1.bf16.msra.mxu0 %v116
    %134 = vmatprep.subr.bf16.mxu0 0
    %135 = vmatpush1.bf16.msra.mxu0 %v117
    %136 = vmatprep.subr.bf16.mxu0 0
    %137 = vmatpush1.bf16.msra.mxu0 %v118
    %138 = vmatprep.subr.bf16.mxu0 0
    %139 = vmatpush1.bf16.msra.mxu0 %v119
    %140 = vmatprep.subr.bf16.mxu0 0
    %141 = vmatpush1.bf16.msra.mxu0 %v120
    %142 = vmatprep.subr.bf16.mxu0 0
    %143 = vmatpush1.bf16.msra.mxu0 %v121
    %144 = vmatprep.subr.bf16.mxu0 0
    %145 = vmatpush1.bf16.msra.mxu0 %v122
    %146 = vmatprep.subr.bf16.mxu0 0
    %147 = vmatpush1.bf16.msra.mxu0 %v123
    %148 = vmatprep.subr.bf16.mxu0 0
    %149 = vmatpush1.bf16.msra.mxu0 0
    %150 = vmatprep.subr.bf16.mxu0 0
    %151 = vmatpush1.bf16.msra.mxu0 0
    %152 = vmatprep.subr.bf16.mxu0 0
    %153 = vmatpush1.bf16.msra.mxu0 0
    %154 = vmatprep.subr.bf16.mxu0 0
    %155 = vmatpush1.bf16.msra.mxu0 0
    %156 = vmatprep.subr.bf16.mxu0 0
    %157 = vmatpush1.bf16.msra.mxu0 0
    %158 = vmatprep.subr.bf16.mxu0 0
    %159 = vmatpush1.bf16.msra.mxu0 0
    %160 = vmatprep.subr.bf16.mxu0 0
    %161 = vmatpush1.bf16.msra.mxu0 0
    %162 = vmatprep.subr.bf16.mxu0 0
    %163 = vmatpush1.bf16.msra.mxu0 0
    %164 = vmatprep.mubr.bf16.mxu0 0
    %165 = vmatmul.mubr.bf16.gmra.mrb[0].mxu0 %v82
    %v166 = vpop.f32.mrb[0].mxu0
    %v167 = vadd.f32 %v77, %v166
    %v168 = vpop.f32.mrb[0].mxu0
    %v169 = vpop.f32.mrb[0].mxu0
    %v170 = vadd.f32 %v77, %v169
    %v171 = vpop.f32.mrb[0].mxu0
    %172 = vdwg.mxu0
    %v173 = vmul.f32 %v167, 0.5
    %v174 = vmul.f32 %v170, 0.5
    %v175 = vmul.f32 %v167, %v167
    %v176 = vmul.f32 %v170, %v170
    %v177 = vmul.f32 %v175, %v167
    %v178 = vmul.f32 %v176, %v170
    %v179 = vmul.f32 %v177, 0.044715
    %v180 = vmul.f32 %v178, 0.044715
    %v181 = vadd.f32 %v167, %v179
    %v182 = vadd.f32 %v170, %v180
    %v183 = vmul.f32 %v181, 0.7978846
    %v184 = vmul.f32 %v182, 0.7978846
    %v185 = vtanh.pop %v183
    %v186 = vtanh.pop %v184
    %v187 = vadd.f32 %v185, 1.0
    %v188 = vadd.f32 %v186, 1.0
    %v189 = vmul.f32 %v173, %v187
    %v190 = vmul.f32 %v174, %v188
    %v191 = vpack.c.bf16 %v190, %v189
    %s192 = scalar_lea.vmem [#allocation5], 64
    %v193 = vld [vmem:[%s192] sm:$0xf]
    %v194 = vld [vmem:[%s192 + $0x4] sm:$0xf]
    %v195 = vld [vmem:[%s192 + $0x8] sm:$0xf]
    %v196 = vld [vmem:[%s192 + $0xc] sm:$0xf]
    %v197 = vld [vmem:[%s192 + $0x10] sm:$0xf]
    %v198 = vld [vmem:[%s192 + $0x14] sm:$0xf]
    %v199 = vld [vmem:[%s192 + $0x18] sm:$0xf]
    %v200 = vld [vmem:[%s192 + $0x1c] sm:$0xf]
    %v201 = vld [vmem:[%s192 + $0x20] sm:$0xf]
    %v202 = vld [vmem:[%s192 + $0x24] sm:$0xf]
    %v203 = vld [vmem:[%s192 + $0x28] sm:$0xf]
    %v204 = vld [vmem:[%s192 + $0x2c] sm:$0xf]
    %v205 = vld [vmem:[%s192 + $0x30] sm:$0xf]
    %v206 = vld [vmem:[%s192 + $0x34] sm:$0xf]
    %v207 = vld [vmem:[%s192 + $0x38] sm:$0xf]
    %v208 = vld [vmem:[%s192 + $0x3c] sm:$0xf]
    %v209 = vld [vmem:[#allocation7 + $0x1] sm:$0x1]
    %v210 = vlaneseq
    %v211 = vshrl.u32 %v210, 7
    %v212 = vsub.s32 0, %v211
    %v213 = vrot.slane %v209, %v212
    %v230 = vunpack.c.l.b16 %v193
    %v231 = vunpack.c.l.b16 %v194
    %v232 = vunpack.c.l.b16 %v195
    %v233 = vunpack.c.l.b16 %v196
    %v234 = vunpack.c.l.b16 %v197
    %v235 = vunpack.c.l.b16 %v198
    %v236 = vunpack.c.l.b16 %v199
    %v237 = vunpack.c.l.b16 %v200
    %v238 = vunpack.c.l.b16 %v201
    %v239 = vunpack.c.l.b16 %v202
    %v240 = vunpack.c.l.b16 %v203
    %v241 = vunpack.c.l.b16 %v204
    %v242 = vunpack.c.l.b16 %v205
    %v243 = vunpack.c.l.b16 %v206
    %v244 = vunpack.c.l.b16 %v207
    %v245 = vunpack.c.l.b16 %v208
    %v246 = vpack.c.b16 %v231, %v230
    %v247 = vpack.c.b16 %v233, %v232
    %v248 = vpack.c.b16 %v235, %v234
    %v249 = vpack.c.b16 %v237, %v236
    %v250 = vpack.c.b16 %v239, %v238
    %v251 = vpack.c.b16 %v241, %v240
    %v252 = vpack.c.b16 %v243, %v242
    %v253 = vpack.c.b16 %v245, %v244
    %262 = vmatprep.subr.bf16.mxu0 0
    %263 = vmatpush1.bf16.msra.mxu0 %v246
    %264 = vmatprep.subr.bf16.mxu0 0
    %265 = vmatpush1.bf16.msra.mxu0 %v247
    %266 = vmatprep.subr.bf16.mxu0 0
    %267 = vmatpush1.bf16.msra.mxu0 %v248
    %268 = vmatprep.subr.bf16.mxu0 0
    %269 = vmatpush1.bf16.msra.mxu0 %v249
    %270 = vmatprep.subr.bf16.mxu0 0
    %271 = vmatpush1.bf16.msra.mxu0 %v250
    %272 = vmatprep.subr.bf16.mxu0 0
    %273 = vmatpush1.bf16.msra.mxu0 %v251
    %274 = vmatprep.subr.bf16.mxu0 0
    %275 = vmatpush1.bf16.msra.mxu0 %v252
    %276 = vmatprep.subr.bf16.mxu0 0
    %277 = vmatpush1.bf16.msra.mxu0 %v253
    %278 = vmatprep.subr.bf16.mxu0 0
    %279 = vmatpush1.bf16.msra.mxu0 0
    %280 = vmatprep.subr.bf16.mxu0 0
    %281 = vmatpush1.bf16.msra.mxu0 0
    %282 = vmatprep.subr.bf16.mxu0 0
    %283 = vmatpush1.bf16.msra.mxu0 0
    %284 = vmatprep.subr.bf16.mxu0 0
    %285 = vmatpush1.bf16.msra.mxu0 0
    %286 = vmatprep.subr.bf16.mxu0 0
    %287 = vmatpush1.bf16.msra.mxu0 0
    %288 = vmatprep.subr.bf16.mxu0 0
    %289 = vmatpush1.bf16.msra.mxu0 0
    %290 = vmatprep.subr.bf16.mxu0 0
    %291 = vmatpush1.bf16.msra.mxu0 0
    %292 = vmatprep.subr.bf16.mxu0 0
    %293 = vmatpush1.bf16.msra.mxu0 0
    %294 = vmatprep.mubr.bf16.mxu0 0
    %295 = vmatmul.mubr.bf16.gmra.mrb[0].mxu0 %v191
    %v296 = vpop.f32.mrb[0].mxu0
    %v297 = vadd.f32 %v213, %v296
    %v298 = vpop.f32.mrb[0].mxu0
    %v299 = vpop.f32.mrb[0].mxu0
    %v300 = vadd.f32 %v213, %v299
    %v301 = vpop.f32.mrb[0].mxu0
    %302 = vdwg.mxu0
    %v303 = vmul.f32 %v297, 0.5
    %v304 = vmul.f32 %v300, 0.5
    %v305 = vmul.f32 %v297, %v297
    %v306 = vmul.f32 %v300, %v300
    %v307 = vmul.f32 %v305, %v297
    %v308 = vmul.f32 %v306, %v300
    %v309 = vmul.f32 %v307, 0.044715
    %v310 = vmul.f32 %v308, 0.044715
    %v311 = vadd.f32 %v297, %v309
    %v312 = vadd.f32 %v300, %v310
    %v313 = vmul.f32 %v311, 0.7978846
    %v314 = vmul.f32 %v312, 0.7978846
    %v315 = vtanh.pop %v313
    %v316 = vtanh.pop %v314
    %v317 = vadd.f32 %v315, 1.0
    %v318 = vadd.f32 %v316, 1.0
    %v319 = vmul.f32 %v303, %v317
    %v320 = vmul.f32 %v304, %v318
    %v321 = vpack.c.bf16 %v320, %v319
    %s322 = scalar_lea.vmem [#allocation5], 128
    %v323 = vld [vmem:[%s322] sm:$0xf]
    %v324 = vld [vmem:[%s322 + $0x4] sm:$0xf]
    %v325 = vld [vmem:[%s322 + $0x8] sm:$0xf]
    %v326 = vld [vmem:[%s322 + $0xc] sm:$0xf]
    %v327 = vld [vmem:[%s322 + $0x10] sm:$0xf]
    %v328 = vld [vmem:[%s322 + $0x14] sm:$0xf]
    %v329 = vld [vmem:[%s322 + $0x18] sm:$0xf]
    %v330 = vld [vmem:[%s322 + $0x1c] sm:$0xf]
    %v331 = vld [vmem:[%s322 + $0x20] sm:$0xf]
    %v332 = vld [vmem:[%s322 + $0x24] sm:$0xf]
    %v333 = vld [vmem:[%s322 + $0x28] sm:$0xf]
    %v334 = vld [vmem:[%s322 + $0x2c] sm:$0xf]
    %v335 = vld [vmem:[%s322 + $0x30] sm:$0xf]
    %v336 = vld [vmem:[%s322 + $0x34] sm:$0xf]
    %v337 = vld [vmem:[%s322 + $0x38] sm:$0xf]
    %v338 = vld [vmem:[%s322 + $0x3c] sm:$0xf]
    %v339 = vld [vmem:[#allocation7 + $0x2] sm:$0x1]
    %v340 = vlaneseq
    %v341 = vshrl.u32 %v340, 7
    %v342 = vsub.s32 0, %v341
    %v343 = vrot.slane %v339, %v342
    %v360 = vunpack.c.l.b16 %v323
    %v361 = vunpack.c.l.b16 %v324
    %v362 = vunpack.c.l.b16 %v325
    %v363 = vunpack.c.l.b16 %v326
    %v364 = vunpack.c.l.b16 %v327
    %v365 = vunpack.c.l.b16 %v328
    %v366 = vunpack.c.l.b16 %v329
    %v367 = vunpack.c.l.b16 %v330
    %v368 = vunpack.c.l.b16 %v331
    %v369 = vunpack.c.l.b16 %v332
    %v370 = vunpack.c.l.b16 %v333
    %v371 = vunpack.c.l.b16 %v334
    %v372 = vunpack.c.l.b16 %v335
    %v373 = vunpack.c.l.b16 %v336
    %v374 = vunpack.c.l.b16 %v337
    %v375 = vunpack.c.l.b16 %v338
    %v376 = vpack.c.b16 %v361, %v360
    %v377 = vpack.c.b16 %v363, %v362
    %v378 = vpack.c.b16 %v365, %v364
    %v379 = vpack.c.b16 %v367, %v366
    %v380 = vpack.c.b16 %v369, %v368
    %v381 = vpack.c.b16 %v371, %v370
    %v382 = vpack.c.b16 %v373, %v372
    %v383 = vpack.c.b16 %v375, %v374
    %392 = vmatprep.subr.bf16.mxu0 0
    %393 = vmatpush1.bf16.msra.mxu0 %v376
    %394 = vmatprep.subr.bf16.mxu0 0
    %395 = vmatpush1.bf16.msra.mxu0 %v377
    %396 = vmatprep.subr.bf16.mxu0 0
    %397 = vmatpush1.bf16.msra.mxu0 %v378
    %398 = vmatprep.subr.bf16.mxu0 0
    %399 = vmatpush1.bf16.msra.mxu0 %v379
    %400 = vmatprep.subr.bf16.mxu0 0
    %401 = vmatpush1.bf16.msra.mxu0 %v380
    %402 = vmatprep.subr.bf16.mxu0 0
    %403 = vmatpush1.bf16.msra.mxu0 %v381
    %404 = vmatprep.subr.bf16.mxu0 0
    %405 = vmatpush1.bf16.msra.mxu0 %v382
    %406 = vmatprep.subr.bf16.mxu0 0
    %407 = vmatpush1.bf16.msra.mxu0 %v383
    %408 = vmatprep.subr.bf16.mxu0 0
    %409 = vmatpush1.bf16.msra.mxu0 0
    %410 = vmatprep.subr.bf16.mxu0 0
    %411 = vmatpush1.bf16.msra.mxu0 0
    %412 = vmatprep.subr.bf16.mxu0 0
    %413 = vmatpush1.bf16.msra.mxu0 0
    %414 = vmatprep.subr.bf16.mxu0 0
    %415 = vmatpush1.bf16.msra.mxu0 0
    %416 = vmatprep.subr.bf16.mxu0 0
    %417 = vmatpush1.bf16.msra.mxu0 0
    %418 = vmatprep.subr.bf16.mxu0 0
    %419 = vmatpush1.bf16.msra.mxu0 0
    %420 = vmatprep.subr.bf16.mxu0 0
    %421 = vmatpush1.bf16.msra.mxu0 0
    %422 = vmatprep.subr.bf16.mxu0 0
    %423 = vmatpush1.bf16.msra.mxu0 0
    %424 = vmatprep.mubr.bf16.mxu0 0
    %425 = vmatmul.mubr.bf16.gmra.mrb[0].mxu0 %v321
    %v426 = vpop.f32.mrb[0].mxu0
    %v427 = vadd.f32 %v343, %v426
    %v428 = vpop.f32.mrb[0].mxu0
    %v429 = vpop.f32.mrb[0].mxu0
    %v430 = vadd.f32 %v343, %v429
    %v431 = vpop.f32.mrb[0].mxu0
    %432 = vdwg.mxu0
    %v433 = vmul.f32 %v427, 0.5
    %v434 = vmul.f32 %v430, 0.5
    %v435 = vmul.f32 %v427, %v427
    %v436 = vmul.f32 %v430, %v430
    %v437 = vmul.f32 %v435, %v427
    %v438 = vmul.f32 %v436, %v430
    %v439 = vmul.f32 %v437, 0.044715
    %v440 = vmul.f32 %v438, 0.044715
    %v441 = vadd.f32 %v427, %v439
    %v442 = vadd.f32 %v430, %v440
    %v443 = vmul.f32 %v441, 0.7978846
    %v444 = vmul.f32 %v442, 0.7978846
    %v445 = vtanh.pop %v443
    %v446 = vtanh.pop %v444
    %v447 = vadd.f32 %v445, 1.0
    %v448 = vadd.f32 %v446, 1.0
    %v449 = vmul.f32 %v433, %v447
    %v450 = vmul.f32 %v434, %v448
    %v451 = vpack.c.bf16 %v450, %v449
    %s452 = scalar_lea.vmem [#allocation5], 192
    %v453 = vld [vmem:[%s452] sm:$0xf]
    %v454 = vld [vmem:[%s452 + $0x4] sm:$0xf]
    %v455 = vld [vmem:[%s452 + $0x8] sm:$0xf]
    %v456 = vld [vmem:[%s452 + $0xc] sm:$0xf]
    %v457 = vld [vmem:[%s452 + $0x10] sm:$0xf]
    %v458 = vld [vmem:[%s452 + $0x14] sm:$0xf]
    %v459 = vld [vmem:[%s452 + $0x18] sm:$0xf]
    %v460 = vld [vmem:[%s452 + $0x1c] sm:$0xf]
    %v461 = vld [vmem:[%s452 + $0x20] sm:$0xf]
    %v462 = vld [vmem:[%s452 + $0x24] sm:$0xf]
    %v463 = vld [vmem:[%s452 + $0x28] sm:$0xf]
    %v464 = vld [vmem:[%s452 + $0x2c] sm:$0xf]
    %v465 = vld [vmem:[%s452 + $0x30] sm:$0xf]
    %v466 = vld [vmem:[%s452 + $0x34] sm:$0xf]
    %v467 = vld [vmem:[%s452 + $0x38] sm:$0xf]
    %v468 = vld [vmem:[%s452 + $0x3c] sm:$0xf]
    %v469 = vld [vmem:[#allocation7 + $0x3] sm:$0x1]
    %v470 = vlaneseq
    %v471 = vshrl.u32 %v470, 7
    %v472 = vsub.s32 0, %v471
    %v473 = vrot.slane %v469, %v472
    %v490 = vunpack.c.l.b16 %v453
    %v491 = vunpack.c.l.b16 %v454
    %v492 = vunpack.c.l.b16 %v455
    %v493 = vunpack.c.l.b16 %v456
    %v494 = vunpack.c.l.b16 %v457
    %v495 = vunpack.c.l.b16 %v458
    %v496 = vunpack.c.l.b16 %v459
    %v497 = vunpack.c.l.b16 %v460
    %v498 = vunpack.c.l.b16 %v461
    %v499 = vunpack.c.l.b16 %v462
    %v500 = vunpack.c.l.b16 %v463
    %v501 = vunpack.c.l.b16 %v464
    %v502 = vunpack.c.l.b16 %v465
    %v503 = vunpack.c.l.b16 %v466
    %v504 = vunpack.c.l.b16 %v467
    %v505 = vunpack.c.l.b16 %v468
    %v506 = vpack.c.b16 %v491, %v490
    %v507 = vpack.c.b16 %v493, %v492
    %v508 = vpack.c.b16 %v495, %v494
    %v509 = vpack.c.b16 %v497, %v496
    %v510 = vpack.c.b16 %v499, %v498
    %v511 = vpack.c.b16 %v501, %v500
    %v512 = vpack.c.b16 %v503, %v502
    %v513 = vpack.c.b16 %v505, %v504
    %522 = vmatprep.subr.bf16.mxu0 0
    %523 = vmatpush1.bf16.msra.mxu0 %v506
    %524 = vmatprep.subr.bf16.mxu0 0
    %525 = vmatpush1.bf16.msra.mxu0 %v507
    %526 = vmatprep.subr.bf16.mxu0 0
    %527 = vmatpush1.bf16.msra.mxu0 %v508
    %528 = vmatprep.subr.bf16.mxu0 0
    %529 = vmatpush1.bf16.msra.mxu0 %v509
    %530 = vmatprep.subr.bf16.mxu0 0
    %531 = vmatpush1.bf16.msra.mxu0 %v510
    %532 = vmatprep.subr.bf16.mxu0 0
    %533 = vmatpush1.bf16.msra.mxu0 %v511
    %534 = vmatprep.subr.bf16.mxu0 0
    %535 = vmatpush1.bf16.msra.mxu0 %v512
    %536 = vmatprep.subr.bf16.mxu0 0
    %537 = vmatpush1.bf16.msra.mxu0 %v513
    %538 = vmatprep.subr.bf16.mxu0 0
    %539 = vmatpush1.bf16.msra.mxu0 0
    %540 = vmatprep.subr.bf16.mxu0 0
    %541 = vmatpush1.bf16.msra.mxu0 0
    %542 = vmatprep.subr.bf16.mxu0 0
    %543 = vmatpush1.bf16.msra.mxu0 0
    %544 = vmatprep.subr.bf16.mxu0 0
    %545 = vmatpush1.bf16.msra.mxu0 0
    %546 = vmatprep.subr.bf16.mxu0 0
    %547 = vmatpush1.bf16.msra.mxu0 0
    %548 = vmatprep.subr.bf16.mxu0 0
    %549 = vmatpush1.bf16.msra.mxu0 0
    %550 = vmatprep.subr.bf16.mxu0 0
    %551 = vmatpush1.bf16.msra.mxu0 0
    %552 = vmatprep.subr.bf16.mxu0 0
    %553 = vmatpush1.bf16.msra.mxu0 0
    %554 = vmatprep.mubr.bf16.mxu0 0
    %555 = vmatmul.mubr.bf16.gmra.mrb[0].mxu0 %v451
    %v556 = vpop.f32.mrb[0].mxu0
    %v557 = vadd.f32 %v473, %v556
    %v558 = vpop.f32.mrb[0].mxu0
    %v559 = vpop.f32.mrb[0].mxu0
    %v560 = vadd.f32 %v473, %v559
    %v561 = vpop.f32.mrb[0].mxu0
    %562 = vdwg.mxu0
    %v563 = vmul.f32 %v557, 0.5
    %v564 = vmul.f32 %v560, 0.5
    %v565 = vmul.f32 %v557, %v557
    %v566 = vmul.f32 %v560, %v560
    %v567 = vmul.f32 %v565, %v557
    %v568 = vmul.f32 %v566, %v560
    %v569 = vmul.f32 %v567, 0.044715
    %v570 = vmul.f32 %v568, 0.044715
    %v571 = vadd.f32 %v557, %v569
    %v572 = vadd.f32 %v560, %v570
    %v573 = vmul.f32 %v571, 0.7978846
    %v574 = vmul.f32 %v572, 0.7978846
    %v575 = vtanh.pop %v573
    %v576 = vtanh.pop %v574
    %v577 = vadd.f32 %v575, 1.0
    %v578 = vadd.f32 %v576, 1.0
    %v579 = vmul.f32 %v563, %v577
    %v580 = vmul.f32 %v564, %v578
    %v581 = vpack.c.bf16 %v580, %v579
    %s582 = scalar_lea.vmem [#allocation5], 256
    %v583 = vld [vmem:[%s582] sm:$0xf]
    %v584 = vld [vmem:[%s582 + $0x4] sm:$0xf]
    %v585 = vld [vmem:[%s582 + $0x8] sm:$0xf]
    %v586 = vld [vmem:[%s582 + $0xc] sm:$0xf]
    %v587 = vld [vmem:[%s582 + $0x10] sm:$0xf]
    %v588 = vld [vmem:[%s582 + $0x14] sm:$0xf]
    %v589 = vld [vmem:[%s582 + $0x18] sm:$0xf]
    %v590 = vld [vmem:[%s582 + $0x1c] sm:$0xf]
    %v591 = vld [vmem:[%s582 + $0x20] sm:$0xf]
    %v592 = vld [vmem:[%s582 + $0x24] sm:$0xf]
    %v593 = vld [vmem:[%s582 + $0x28] sm:$0xf]
    %v594 = vld [vmem:[%s582 + $0x2c] sm:$0xf]
    %v595 = vld [vmem:[%s582 + $0x30] sm:$0xf]
    %v596 = vld [vmem:[%s582 + $0x34] sm:$0xf]
    %v597 = vld [vmem:[%s582 + $0x38] sm:$0xf]
    %v598 = vld [vmem:[%s582 + $0x3c] sm:$0xf]
    %v599 = vld [vmem:[#allocation7 + $0x4] sm:$0x1]
    %v600 = vlaneseq
    %v601 = vshrl.u32 %v600, 7
    %v602 = vsub.s32 0, %v601
    %v603 = vrot.slane %v599, %v602
    %v620 = vunpack.c.l.b16 %v583
    %v621 = vunpack.c.l.b16 %v584
    %v622 = vunpack.c.l.b16 %v585
    %v623 = vunpack.c.l.b16 %v586
    %v624 = vunpack.c.l.b16 %v587
    %v625 = vunpack.c.l.b16 %v588
    %v626 = vunpack.c.l.b16 %v589
    %v627 = vunpack.c.l.b16 %v590
    %v628 = vunpack.c.l.b16 %v591
    %v629 = vunpack.c.l.b16 %v592
    %v630 = vunpack.c.l.b16 %v593
    %v631 = vunpack.c.l.b16 %v594
    %v632 = vunpack.c.l.b16 %v595
    %v633 = vunpack.c.l.b16 %v596
    %v634 = vunpack.c.l.b16 %v597
    %v635 = vunpack.c.l.b16 %v598
    %v636 = vpack.c.b16 %v621, %v620
    %v637 = vpack.c.b16 %v623, %v622
    %v638 = vpack.c.b16 %v625, %v624
    %v639 = vpack.c.b16 %v627, %v626
    %v640 = vpack.c.b16 %v629, %v628
    %v641 = vpack.c.b16 %v631, %v630
    %v642 = vpack.c.b16 %v633, %v632
    %v643 = vpack.c.b16 %v635, %v634
    %652 = vmatprep.subr.bf16.mxu0 0
    %653 = vmatpush1.bf16.msra.mxu0 %v636
    %654 = vmatprep.subr.bf16.mxu0 0
    %655 = vmatpush1.bf16.msra.mxu0 %v637
    %656 = vmatprep.subr.bf16.mxu0 0
    %657 = vmatpush1.bf16.msra.mxu0 %v638
    %658 = vmatprep.subr.bf16.mxu0 0
    %659 = vmatpush1.bf16.msra.mxu0 %v639
    %660 = vmatprep.subr.bf16.mxu0 0
    %661 = vmatpush1.bf16.msra.mxu0 %v640
    %662 = vmatprep.subr.bf16.mxu0 0
    %663 = vmatpush1.bf16.msra.mxu0 %v641
    %664 = vmatprep.subr.bf16.mxu0 0
    %665 = vmatpush1.bf16.msra.mxu0 %v642
    %666 = vmatprep.subr.bf16.mxu0 0
    %667 = vmatpush1.bf16.msra.mxu0 %v643
    %668 = vmatprep.subr.bf16.mxu0 0
    %669 = vmatpush1.bf16.msra.mxu0 0
    %670 = vmatprep.subr.bf16.mxu0 0
    %671 = vmatpush1.bf16.msra.mxu0 0
    %672 = vmatprep.subr.bf16.mxu0 0
    %673 = vmatpush1.bf16.msra.mxu0 0
    %674 = vmatprep.subr.bf16.mxu0 0
    %675 = vmatpush1.bf16.msra.mxu0 0
    %676 = vmatprep.subr.bf16.mxu0 0
    %677 = vmatpush1.bf16.msra.mxu0 0
    %678 = vmatprep.subr.bf16.mxu0 0
    %679 = vmatpush1.bf16.msra.mxu0 0
    %680 = vmatprep.subr.bf16.mxu0 0
    %681 = vmatpush1.bf16.msra.mxu0 0
    %682 = vmatprep.subr.bf16.mxu0 0
    %683 = vmatpush1.bf16.msra.mxu0 0
    %684 = vmatprep.mubr.bf16.mxu0 0
    %685 = vmatmul.mubr.bf16.gmra.mrb[0].mxu0 %v581
    %v686 = vpop.f32.mrb[0].mxu0
    %v687 = vadd.f32 %v603, %v686
    %v688 = vpop.f32.mrb[0].mxu0
    %v689 = vpop.f32.mrb[0].mxu0
    %v690 = vadd.f32 %v603, %v689
    %v691 = vpop.f32.mrb[0].mxu0
    %692 = vdwg.mxu0
    %693 = vst [vmem:[#allocation8] sm:$0xff] %v687
    %694 = vst [vmem:[#allocation8 + $0x8] sm:$0xff] %v690
    // Predicated region
    $region26: #{tpu_custom_call.1} parent=1 // pred_check
      _
    $region27: #{tpu_custom_call.1} parent=1 // pred_check_branch
      %696 = sbr.rel (0) target = $region29
    $region28: #{tpu_custom_call.1} parent=1 // pred_region
      %s698 = ssub.s32 256, 256
      %699 = vsyncadd [#allocation4], %s698
      %s700 = sshll.u32 [#allocation8], 4
      %s701 = int_to_ptr.vmem [resolvable:$true] %s700
      %706 = dma.vmem_to_hbm [thread:$0]  %s701, 256, %s3, [#allocation4], 128, 128, 8
    $region29: #{tpu_custom_call.1} parent=1 // pred_fallthru
      _
    // Predicated region
    $region30: #{tpu_custom_call.1} parent=1 // pred_check
      _
    $region31: #{tpu_custom_call.1} parent=1 // pred_check_branch
      %708 = sbr.rel (0) target = $region33
    $region32: #{tpu_custom_call.1} parent=1 // pred_region
      %709 = dma.done [#allocation4], 256
    $region33: #{tpu_custom_call.1} parent=1 // pred_fallthru
      _
    %710 = vsyncpa [#allocation3], 1
    %711 = vsyncpa [#allocation6], 1
    %712 = vsyncpa [#allocation4], 1

</llo_original>
